<compile_context>
chip_gen: v5e
topology: v5e:2x2
jax: 0.10.0
libtpu: 0.0.40
codegen_flags: <defaults>
</compile_context>

<pallas_src>
import jax
import jax.numpy as jnp
from jax import lax
from jax.experimental import pallas as pl
from jax.experimental.pallas import tpu as pltpu

LANE = 128      # TPU lane width: M tiles are multiples of this (lane-dense stores)
SUBLANE = 8     # f32 sublane packing (OC padding target)
SUBLANE_BF16 = 16  # bf16 sublane packing (K padding target for bf16 feeds)


def _binary_tanh(v):
    # binary_tanh(x, scale=1, stochastic=False) == 2*round(hard_sigmoid(x)) - 1
    # jnp.round is round-half-to-even, matching torch.round.
    return 2.0 * jnp.round(jnp.clip((v + 1.0) * 0.5, 0.0, 1.0)) - 1.0


def _round_up(x, m):
    return (x + m - 1) // m * m


def _pick_tm(m, kp, ocp, in_bytes, *, tm_max=512, min_grid_steps=2,
             vmem_budget_bytes=16 << 20):
    """Largest M tile (multiple of LANE) satisfying the VMEM budget and megacore split.

    Budget ~= 2 * (kp*tm*in_bytes + ocp*tm*4) for the double-buffered streamed patch
    and f32 output tiles (weight/bias residents are negligible).  16 MiB is safe on
    all of v5e/v6e (128 MiB VMEM) and v7x (64 MiB physical / 32 MiB scoped default).
    Keeping >= min_grid_steps tiles (when M allows) lets the "parallel" M axis be
    split across v7x's two TensorCores; harmless on single-TC v5e/v6e.
    """
    per_tm_bytes = 2 * (kp * in_bytes + ocp * 4)
    tm_vmem = max(LANE, (vmem_budget_bytes // per_tm_bytes) // LANE * LANE)
    tm_split = _round_up((m + min_grid_steps - 1) // min_grid_steps, LANE)
    return max(LANE, min(tm_max, tm_vmem, tm_split))


def _binary_conv_kernel(w_ref, p_ref, b_ref, o_ref):
    # w_ref: (OCp, Kp)  pre-binarized (+/-1, zero-padded) weight, VMEM-resident
    # p_ref: (Kp, TM)   im2col patch tile — M on the lane axis, streamed over grid
    # b_ref: (OCp, 1)   pre-binarized (zero-padded) f32 bias column
    # o_ref: (OCp, TM)  f32 lane-dense output tile
    acc = jnp.dot(w_ref[...], p_ref[...], preferred_element_type=jnp.float32)
    o_ref[...] = acc + b_ref[...]


def binary_conv2d(x, weight, bias, *, tm=512, compute_dtype=jnp.bfloat16):
    """Forward of BinaryConv2d with stride=1, padding=0 (nn.Conv2d defaults).

    x:      [N, C, H, W]    float32
    weight: [OC, C, KH, KW] float32
    bias:   [OC]            float32
    returns [N, OC, OH, OW] float32

    compute_dtype=bf16 feeds the MXU bf16 operands (exact for the +/-1 weights,
    rounds the activations once); pass jnp.float32 for bit-exact f32 semantics.
    """
    n, c, h, w = x.shape
    oc, _, kh, kw = weight.shape
    oh, ow = h - kh + 1, w - kw + 1
    m = n * oh * ow
    k = kh * kw * c
    in_bytes = jnp.dtype(compute_dtype).itemsize

    # --- parameters: binarize once in f32, cast (+/-1 exact), THEN zero-pad ---
    w_bin = _binary_tanh(weight)                       # [OC, C, KH, KW], exactly +/-1
    b_bin = _binary_tanh(bias)                         # [OC]
    w_flat = w_bin.reshape(oc, k).astype(compute_dtype)  # [OC, K], K order (c, kh, kw)

    k_sub = SUBLANE_BF16 if in_bytes == 2 else SUBLANE
    kp = _round_up(k, k_sub)
    ocp = _round_up(oc, SUBLANE)

    w_pad = jnp.pad(w_flat, ((0, ocp - oc), (0, kp - k)))          # [OCp, Kp]
    b_pad = jnp.pad(b_bin, (0, ocp - oc)).reshape(ocp, 1)          # [OCp, 1] f32

    # --- im2col in [K, M] order (K = (c, kh, kw), M = (n, oh, ow)) ---
    # Cast activations once, wrapper-side (keeps the kernel's VALU slots clean on v5e).
    x_c = jnp.transpose(x.astype(compute_dtype), (1, 0, 2, 3))     # [C, N, H, W]
    cols = [x_c[:, :, i:i + oh, j:j + ow]
            for i in range(kh) for j in range(kw)]                 # each [C, N, OH, OW]
    patches = jnp.stack(cols, axis=1).reshape(k, m)                # [K, M]

    tm_eff = _pick_tm(m, kp, ocp, in_bytes, tm_max=tm)
    mp = _round_up(m, tm_eff)
    patches = jnp.pad(patches, ((0, kp - k), (0, mp - m)))         # [Kp, Mp]

    grid = (mp // tm_eff,)
    out_flat = pl.pallas_call(
        _binary_conv_kernel,
        out_shape=jax.ShapeDtypeStruct((ocp, mp), jnp.float32),
        grid_spec=pltpu.PrefetchScalarGridSpec(
            num_scalar_prefetch=0,
            grid=grid,
            in_specs=[
                pl.BlockSpec((ocp, kp), lambda i: (0, 0)),   # weight: VMEM-resident
                pl.BlockSpec((kp, tm_eff), lambda i: (0, i)),  # patches stream over M
                pl.BlockSpec((ocp, 1), lambda i: (0, 0)),    # bias: VMEM-resident
            ],
            out_specs=pl.BlockSpec((ocp, tm_eff), lambda i: (0, i)),
        ),
        compiler_params=pltpu.CompilerParams(
            # Disjoint M tiles -> shard across v7x's two TCs; neutral on v5e/v6e.
            dimension_semantics=("parallel",),
            # NOTE: tile VMEM here is << 1 MiB; _pick_tm already caps the budget at
            # 16 MiB so no explicit vmem_limit_bytes is needed on any generation.
        ),
        cost_estimate=pl.CostEstimate(
            flops=2 * ocp * mp * kp,
            transcendentals=0,
            bytes_accessed=(kp * mp + ocp * kp) * in_bytes + ocp * mp * 4 + ocp * 4,
        ),
    )(w_pad, patches, b_pad)

    # [OCp, Mp] -> valid region -> [OC, N, OH, OW] -> [N, OC, OH, OW]
    out = out_flat[:oc, :m].reshape(oc, n, oh, ow)
    return jnp.transpose(out, (1, 0, 2, 3))


def _reference(x, weight, bias, compute_dtype=jnp.float32):
    # Pure-JAX reference (lax conv).  compute_dtype rounds the activations the same
    # way the kernel's wrapper does (f32 accumulation in both cases).
    w_bin = _binary_tanh(weight)
    b_bin = _binary_tanh(bias)
    xq = x.astype(compute_dtype).astype(jnp.float32)
    out = lax.conv_general_dilated(
        xq, w_bin, window_strides=(1, 1), padding="VALID",
        dimension_numbers=("NCHW", "OIHW", "NCHW"))
    return out + b_bin[None, :, None, None]


if __name__ == "__main__":
    key = jax.random.PRNGKey(0)
    k_x, k_w, k_b = jax.random.split(key, 3)

    # BinaryConv2d(in_channels=4, out_channels=8, kernel_size=3)
    N, C, H, W = 2, 4, 16, 16
    OC, KH, KW = 8, 3, 3

    x = jax.random.normal(k_x, (N, C, H, W), dtype=jnp.float32)
    # self.conv.weight.data.normal_(0, 0.01)
    weight = 0.01 * jax.random.normal(k_w, (OC, C, KH, KW), dtype=jnp.float32)
    # nn.Conv2d default bias init: U(-1/sqrt(fan_in), 1/sqrt(fan_in))
    fan_in = C * KH * KW
    bound = 1.0 / (fan_in ** 0.5)
    bias = jax.random.uniform(k_b, (OC,), dtype=jnp.float32,
                              minval=-bound, maxval=bound)

    out = binary_conv2d(x, weight, bias)   # default bf16 feed (f32 accumulation)
    out = jax.block_until_ready(out)
    assert out.shape == (N, OC, H - KH + 1, W - KW + 1)

    # Tight check vs a matched-precision reference (same bf16-rounded activations,
    # f32 accumulation): differences are only f32 summation-order noise.
    ref_matched = _reference(x, weight, bias, compute_dtype=jnp.bfloat16)
    assert jnp.allclose(out, ref_matched, atol=1e-4, rtol=1e-4)

    # Loose sanity check vs the pure-f32 reference: bounds the activation-rounding
    # effect of the bf16 feed (K = 36 terms of ~N(0,1), +/-1 weights).
    ref_f32 = _reference(x, weight, bias, compute_dtype=jnp.float32)
    assert jnp.allclose(out, ref_f32, atol=1e-1, rtol=1e-2)

    print("KERNEL_OK")
</pallas_src>

<mosaic_0001>
module attributes {stable_mosaic.version = 11 : i64} {
  func.func @_binary_conv_kernel(%arg0: i32, %arg1: memref<8x48xbf16, #tpu.memory_space<vmem>>, %arg2: memref<48x256xbf16, #tpu.memory_space<vmem>>, %arg3: memref<8x1xf32, #tpu.memory_space<vmem>>, %arg4: memref<8x256xf32, #tpu.memory_space<vmem>>) attributes {dimension_semantics = [#tpu.dimension_semantics<parallel>], iteration_bounds = array<i64: 2>, scalar_prefetch = 0 : i64, scratch_operands = 0 : i64, tpu.core_type = #tpu.core_type<tc>, window_params = [{pipeline_mode = #tpu.pipeline_mode<synchronous>, transform_indices = @transform_0, window_bounds = array<i64: 8, 48>}, {transform_indices = @transform_1, window_bounds = array<i64: 48, 256>}, {pipeline_mode = #tpu.pipeline_mode<synchronous>, transform_indices = @transform_2, window_bounds = array<i64: 8, 1>}, {transform_indices = @transform_3, window_bounds = array<i64: 8, 256>}]} {
    %c0 = arith.constant 0 : index
    %c0_0 = arith.constant 0 : index
    %0 = vector.load %arg1[%c0, %c0_0] : memref<8x48xbf16, #tpu.memory_space<vmem>>, vector<8x48xbf16>
    %c0_1 = arith.constant 0 : index
    %c0_2 = arith.constant 0 : index
    %1 = vector.load %arg2[%c0_1, %c0_2] : memref<48x256xbf16, #tpu.memory_space<vmem>>, vector<48x256xbf16>
    %cst = arith.constant dense<0.000000e+00> : vector<8x256xf32>
    %2 = tpu.matmul %0, %1, %cst {dimension_numbers = #tpu.dot_dimension_numbers<[1], [0], [0], [1], [0, 0, 1, 1], [], []>} : vector<8x48xbf16>, vector<48x256xbf16>, vector<8x256xf32> -> vector<8x256xf32>
    %c0_3 = arith.constant 0 : index
    %c0_4 = arith.constant 0 : index
    %3 = vector.load %arg3[%c0_3, %c0_4] : memref<8x1xf32, #tpu.memory_space<vmem>>, vector<8x1xf32>
    %4 = vector.broadcast %3 : vector<8x1xf32> to vector<8x256xf32>
    %5 = arith.addf %2, %4 : vector<8x256xf32>
    %c0_5 = arith.constant 0 : index
    %c0_6 = arith.constant 0 : index
    %6 = vector.load %arg4[%c0_5, %c0_6] : memref<8x256xf32, #tpu.memory_space<vmem>>, vector<8x256xf32>
    tpu.vector_store %arg4[%c0_5, %c0_6], %5 {strides = array<i32>} : memref<8x256xf32, #tpu.memory_space<vmem>>, vector<8x256xf32>,
    return
  }
  func.func @transform_0(%arg0: i32) -> (i32, i32) {
    %c0_i32 = arith.constant 0 : i32
    %c0_i32_0 = arith.constant 0 : i32
    %c0_i32_1 = arith.constant 0 : i32
    return %c0_i32, %c0_i32_0 : i32, i32
  }
  func.func @transform_1(%arg0: i32) -> (i32, i32) {
    %c0_i32 = arith.constant 0 : i32
    %c0_i32_0 = arith.constant 0 : i32
    return %c0_i32, %arg0 : i32, i32
  }
  func.func @transform_2(%arg0: i32) -> (i32, i32) {
    %c0_i32 = arith.constant 0 : i32
    %c0_i32_0 = arith.constant 0 : i32
    %c0_i32_1 = arith.constant 0 : i32
    return %c0_i32, %c0_i32_0 : i32, i32
  }
  func.func @transform_3(%arg0: i32) -> (i32, i32) {
    %c0_i32 = arith.constant 0 : i32
    %c0_i32_0 = arith.constant 0 : i32
    return %c0_i32, %arg0 : i32, i32
  }
}

</mosaic_0001>

<llo_original>
// kernel: tpu_custom_call.1
$region0: #{tpu_custom_call.1}
  #allocation0 [shape = 'u32[]', space=smem, size = 0x4, offset = 0x4, fixed_abs, tag = 'smem constant byte address 0x4 - core index']
  #allocation1 [shape = 'u32[72,128]{1,0:T(1,128)}', space=vmem, size = 0x9000, scoped, tag = 'internal scratch']
  %s0 = inlined_call_operand.vmem [shape: bf16[8,48], index: 0, kind: input, shape index: {}]
  %s1 = inlined_call_operand.hbm [shape: bf16[48,512], index: 1, kind: input, shape index: {}]
  %s2 = inlined_call_operand.vmem [shape: f32[8,1], index: 2, kind: input, shape index: {}]
  %s3 = inlined_call_operand.hbm [shape: f32[8,512], index: 3, kind: output, shape index: {}]
  %s4 = sld [smem:[#allocation0]]
  $region49: #{tpu_custom_call.1} parent=0
    _
  %s6 = ssub.s32 1, %s4
  %s7 = scalar_select 0, %s6, %s4
  $region1: #{tpu_custom_call.1} parent=0
    #allocation2 [shape = 'u8[49152]{0}', space=vmem, size = 0xc000, scoped, tag = 'input window, operand 1']
    #allocation3 [shape = 's32[2]{0}', space=sflag, size = 0x8, scoped, tag = 'scoped memory for tpu_custom_call.1']
    #allocation4 [shape = 's32[2]{0}', space=sflag, size = 0x8, scoped, tag = 'scoped memory for tpu_custom_call.1']
    #allocation5 [shape = 'u8[16384]{0}', space=vmem, size = 0x4000, scoped, tag = 'output window, operand 0']
    %8 = vsyncpa [#allocation3], 0
    %s9 = scalar_lea.sflag [#allocation3], 1
    %10 = vsyncpa %s9, 0
    %11 = vsyncpa [#allocation4], 0
    %s12 = scalar_lea.sflag [#allocation4], 1
    %13 = vsyncpa %s12, 0
    loop: start=0, step=1, limit=4
    $region2: #{tpu_custom_call.1} parent=1 // loop_pre_header
      _
    $region3: #{tpu_custom_call.1} parent=1 // loop_header
      %s15 = sphi 0, %s19
      %p16 = scmp.ge.s32.totalorder %s15, 4
      %s23 = sphi 0, %s23
      %s25 = sphi 0, %s23
      %s26 = sphi 0, %s25
      %s40 = sphi 0, %s26
      %s46 = sphi 0, %s48
      %s49 = sphi 0, %s46
      %s50 = sphi 0, %s49
      %s66 = sphi 0, %s50
      %s70 = sphi 0, %s70
      %s72 = sphi 0, %s70
      %s73 = sphi 0, %s72
      %s87 = sphi 0, %s73
      %s93 = sphi 0, %s95
      %s96 = sphi 0, %s93
      %s97 = sphi 0, %s96
      %s113 = sphi 0, %s97
    $region4: #{tpu_custom_call.1} parent=1 // loop_header_branch
      %18 = sbr.rel (%p16) target = $region8
    $region5: #{tpu_custom_call.1} parent=1 // loop_body
      %s20 = ssub.s32 %s15, 1
      %s21 = ssub.s32 %s15, 2
      %s22 = sadd.s32 %s15, 1
      %s24 = sadd.s32 %s23, 1
      %p27 = scmp.eq.s32.totalorder %s15, 1
      %p28 = scmp.ne.s32.totalorder %s23, %s25
      %p29 = scmp.eq.s32.totalorder %s15, 0
      %p30 = por %p28, %p29
      %p31 = scmp.ne.s32.totalorder %s23, %s25
      %p32 = scmp.eq.s32.totalorder %s20, 1
      %p33 = por %p31, %p32
      %p34 = scmp.ne.s32.totalorder %s25, %s26
      %p35 = scmp.eq.s32.totalorder %s20, 0
      %p36 = por %p34, %p35
      %p37 = scmp.ne.s32.totalorder %s25, %s26
      %p38 = scmp.eq.s32.totalorder %s21, 1
      %p39 = por %p37, %p38
      %p41 = scmp.ne.s32.totalorder %s26, %s40
      %p42 = scmp.eq.s32.totalorder %s21, 0
      %p43 = por %p41, %p42
      %s44 = ssub.s32 %s15, %s22
      %p45 = scmp.eq.s32.totalorder %s44, 0
      %s47 = sadd.s32 %s46, 1
      %s48 = scalar_select %p45, %s46, %s47
      %p51 = pneg %p45
      %p52 = scmp.eq.s32.totalorder %s15, 1
      %p53 = por %p51, %p52
      %p54 = scmp.ne.s32.totalorder %s46, %s49
      %p55 = scmp.eq.s32.totalorder %s15, 0
      %p56 = por %p54, %p55
      %p57 = scmp.ne.s32.totalorder %s46, %s49
      %p58 = scmp.eq.s32.totalorder %s20, 1
      %p59 = por %p57, %p58
      %p60 = scmp.ne.s32.totalorder %s49, %s50
      %p61 = scmp.eq.s32.totalorder %s20, 0
      %p62 = por %p60, %p61
      %p63 = scmp.ne.s32.totalorder %s49, %s50
      %p64 = scmp.eq.s32.totalorder %s21, 1
      %p65 = por %p63, %p64
      %p67 = scmp.ne.s32.totalorder %s50, %s66
      %p68 = scmp.eq.s32.totalorder %s21, 0
      %p69 = por %p67, %p68
      %s71 = sadd.s32 %s70, 1
      %p74 = scmp.eq.s32.totalorder %s15, 1
      %p75 = scmp.ne.s32.totalorder %s70, %s72
      %p76 = scmp.eq.s32.totalorder %s15, 0
      %p77 = por %p75, %p76
      %p78 = scmp.ne.s32.totalorder %s70, %s72
      %p79 = scmp.eq.s32.totalorder %s20, 1
      %p80 = por %p78, %p79
      %p81 = scmp.ne.s32.totalorder %s72, %s73
      %p82 = scmp.eq.s32.totalorder %s20, 0
      %p83 = por %p81, %p82
      %p84 = scmp.ne.s32.totalorder %s72, %s73
      %p85 = scmp.eq.s32.totalorder %s21, 1
      %p86 = por %p84, %p85
      %p88 = scmp.ne.s32.totalorder %s73, %s87
      %p89 = scmp.eq.s32.totalorder %s21, 0
      %p90 = por %p88, %p89
      %s91 = ssub.s32 %s15, %s22
      %p92 = scmp.eq.s32.totalorder %s91, 0
      %s94 = sadd.s32 %s93, 1
      %s95 = scalar_select %p92, %s93, %s94
      %p98 = pneg %p92
      %p99 = scmp.eq.s32.totalorder %s15, 1
      %p100 = por %p98, %p99
      %p101 = scmp.ne.s32.totalorder %s93, %s96
      %p102 = scmp.eq.s32.totalorder %s15, 0
      %p103 = por %p101, %p102
      %p104 = scmp.ne.s32.totalorder %s93, %s96
      %p105 = scmp.eq.s32.totalorder %s20, 1
      %p106 = por %p104, %p105
      %p107 = scmp.ne.s32.totalorder %s96, %s97
      %p108 = scmp.eq.s32.totalorder %s20, 0
      %p109 = por %p107, %p108
      %p110 = scmp.ne.s32.totalorder %s96, %s97
      %p111 = scmp.eq.s32.totalorder %s21, 1
      %p112 = por %p110, %p111
      %p114 = scmp.ne.s32.totalorder %s97, %s113
      %p115 = scmp.eq.s32.totalorder %s21, 0
      %p116 = por %p114, %p115
      %p117 = scmp.le.s32.totalorder 1, %s15
      %p118 = scmp.lt.s32.totalorder %s15, 3
      %p119 = pnand %p117, %p118
      %p120 = pneg %p119
      // Predicated region
      $region9: #{tpu_custom_call.1} parent=5 // pred_check
        _
      $region10: #{tpu_custom_call.1} parent=5 // pred_check_branch
        %122 = sbr.rel (%p119) target = $region12
      $region11: #{tpu_custom_call.1} parent=5 // pred_region
        %s123 = ssub.s32 %s15, 1
        // Predicated region
        $region13: #{tpu_custom_call.1} parent=11 // pred_check
          %p124 = pneg %p36
        $region14: #{tpu_custom_call.1} parent=11 // pred_check_branch
          %126 = sbr.rel (%p124) target = $region16
        $region15: #{tpu_custom_call.1} parent=11 // pred_region
          _
        $region16: #{tpu_custom_call.1} parent=11 // pred_fallthru
          _
        // Predicated region
        $region17: #{tpu_custom_call.1} parent=11 // pred_check
          %p127 = pneg %p83
        $region18: #{tpu_custom_call.1} parent=11 // pred_check_branch
          %129 = sbr.rel (%p127) target = $region20
        $region19: #{tpu_custom_call.1} parent=11 // pred_region
          _
        $region20: #{tpu_custom_call.1} parent=11 // pred_fallthru
          _
      $region12: #{tpu_custom_call.1} parent=5 // pred_fallthru
        _
      %p130 = scmp.lt.s32.totalorder %s15, 2
      // Predicated region
      $region21: #{tpu_custom_call.1} parent=5 // pred_check
        %p131 = pneg %p130
      $region22: #{tpu_custom_call.1} parent=5 // pred_check_branch
        %133 = sbr.rel (%p131) target = $region24
      $region23: #{tpu_custom_call.1} parent=5 // pred_region
        // Predicated region
        $region25: #{tpu_custom_call.1} parent=23 // pred_check
          %p134 = pneg %p56
        $region26: #{tpu_custom_call.1} parent=23 // pred_check_branch
          %136 = sbr.rel (%p134) target = $region28
        $region27: #{tpu_custom_call.1} parent=23 // pred_region
          %s137 = sand.u32 %s46, 1
          %s138 = scalar_lea.sflag [#allocation3], %s137
          %s139 = sand.u32 %s46, 1
          %s140 = smul.addr %s139, 48
          %s141 = scalar_lea.vmem [#allocation2], %s140
          %s142 = smul.u32 2, %s15
          %144 = vsyncadd %s138, 0
          %s145 = smul.addr %s142, 4
          %s146 = scalar_lea.hbm %s1, %s145
          %s147 = sshll.u32 %s146, 4
          %s148 = int_to_ptr.hbm [resolvable:$true] %s147
          %s149 = sshll.u32 %s141, 4
          %s150 = int_to_ptr.vmem [resolvable:$true] %s149
          %155 = dma.hbm_to_vmem [thread:$0]  %s148, 768, %s150, %s138, 256, 128, 8
        $region28: #{tpu_custom_call.1} parent=23 // pred_fallthru
          _
      $region24: #{tpu_custom_call.1} parent=5 // pred_fallthru
        _
      %p156 = scmp.le.s32.totalorder 1, %s15
      %p157 = scmp.lt.s32.totalorder %s15, 3
      %p158 = pnand %p156, %p157
      %p159 = pneg %p158
      // Predicated region
      $region29: #{tpu_custom_call.1} parent=5 // pred_check
        _
      $region30: #{tpu_custom_call.1} parent=5 // pred_check_branch
        %161 = sbr.rel (%p158) target = $region32
      $region31: #{tpu_custom_call.1} parent=5 // pred_region
        %s162 = ssub.s32 %s15, 1
        %s163 = sand.u32 %s49, 1
        %s164 = scalar_lea.sflag [#allocation3], %s163
        %s165 = sand.u32 %s49, 1
        %s166 = smul.addr %s165, 48
        %s167 = scalar_lea.vmem [#allocation2], %s166
        // Predicated region
        $region33: #{tpu_custom_call.1} parent=31 // pred_check
          %p168 = pneg %p62
        $region34: #{tpu_custom_call.1} parent=31 // pred_check_branch
          %170 = sbr.rel (%p168) target = $region36
        $region35: #{tpu_custom_call.1} parent=31 // pred_region
          %172 = dma.done %s164, 768
        $region36: #{tpu_custom_call.1} parent=31 // pred_fallthru
          _
        %p173 = pneg %p36
        %p174 = pneg %p33
        %s175 = sand.u32 %s49, 1
        %s176 = scalar_lea.sflag [#allocation3], %s175
        %s177 = sand.u32 %s49, 1
        %s178 = smul.addr %s177, 48
        %s179 = scalar_lea.vmem [#allocation2], %s178
        %p180 = pneg %p62
        %p181 = pneg %p59
        %p182 = pneg %p83
        %p183 = pneg %p80
        %p184 = pneg %p109
        %p185 = pneg %p106
        %s186 = sand.u32 %s96, 1
        %s187 = scalar_lea.sflag [#allocation4], %s186
        %s188 = sand.u32 %s96, 1
        %s189 = smul.addr %s188, 16
        %s190 = scalar_lea.vmem [#allocation5], %s189
        %s191 = smul.u32 2, %s20
        %s192 = smul.u32 2, %s20
        %v194 = vld [vmem:[%s0] sm:$0xf]
        %v195 = vld [vmem:[%s167] sm:$0xff]
        %v196 = vld [vmem:[%s167 + $0x8] sm:$0xff]
        %v197 = vld [vmem:[%s167 + $0x10] sm:$0xff]
        %v198 = vld [vmem:[%s167 + $0x18] sm:$0xff]
        %v199 = vld [vmem:[%s167 + $0x20] sm:$0xff]
        %v200 = vld [vmem:[%s167 + $0x28] sm:$0xff]
        %v201 = vld [vmem:[%s2] sm:$0xff]
        %203 = vset.pattern.permute.xlu0 0
        %204 = vperm.xlu0 %203, %v201
        %v205 = vpop.permute.xlu0 %204
        %v213 = vunpack.c.l.b16 %v195
        %v214 = vunpack.c.h.b16 %v195
        %v215 = vunpack.c.l.b16 %v196
        %v216 = vunpack.c.h.b16 %v196
        %v217 = vunpack.c.l.b16 %v197
        %v218 = vunpack.c.h.b16 %v197
        %v219 = vunpack.c.l.b16 %v198
        %v220 = vunpack.c.h.b16 %v198
        %v221 = vunpack.c.l.b16 %v199
        %v222 = vunpack.c.h.b16 %v199
        %v223 = vunpack.c.l.b16 %v200
        %v224 = vunpack.c.h.b16 %v200
        %v225 = vpack.c.b16 %v215, %v213
        %v226 = vpack.c.b16 %v216, %v214
        %v227 = vpack.c.b16 %v219, %v217
        %v228 = vpack.c.b16 %v220, %v218
        %v229 = vpack.c.b16 %v223, %v221
        %v230 = vpack.c.b16 %v224, %v222
        %vm237 = vcmask 392192
        %v239 = vsel %vm237, %v194, 0
        %241 = vmatpush.bf16.msra.mxu0 0
        %242 = vmatpush.bf16.msra.mxu0 0
        %243 = vmatpush.bf16.msra.mxu0 0
        %244 = vmatpush.bf16.msra.mxu0 0
        %245 = vmatpush.bf16.msra.mxu0 0
        %246 = vmatpush.bf16.msra.mxu0 %v229
        %247 = vmatpush.bf16.msra.mxu0 %v227
        %248 = vmatpush.bf16.msra.mxu0 %v225
        %249 = vmatmul.bf16.gmra.mxu0 %v239
        %v250 = vpop.f32.mrf.mxu0
        %v251 = vadd.f32 %v205, %v250
        %v252 = vpop.f32.mrf.mxu0
        %253 = vdwg.mxu0
        %254 = vmatpush.bf16.msra.mxu0 0
        %255 = vmatpush.bf16.msra.mxu0 0
        %256 = vmatpush.bf16.msra.mxu0 0
        %257 = vmatpush.bf16.msra.mxu0 0
        %258 = vmatpush.bf16.msra.mxu0 0
        %259 = vmatpush.bf16.msra.mxu0 %v230
        %260 = vmatpush.bf16.msra.mxu0 %v228
        %261 = vmatpush.bf16.msra.mxu0 %v226
        %262 = vmatmul.bf16.gmra.mxu0 %v239
        %v263 = vpop.f32.mrf.mxu0
        %v264 = vadd.f32 %v205, %v263
        %v265 = vpop.f32.mrf.mxu0
        %266 = vdwg.mxu0
        %267 = vst [vmem:[%s190] sm:$0xff] %v251
        %268 = vst [vmem:[%s190 + $0x8] sm:$0xff] %v264
        %s269 = sand.u32 %s96, 1
        %s270 = scalar_lea.sflag [#allocation4], %s269
        %s271 = sand.u32 %s96, 1
        %s272 = smul.addr %s271, 16
        %s273 = scalar_lea.vmem [#allocation5], %s272
        // Predicated region
        $region37: #{tpu_custom_call.1} parent=31 // pred_check
          %p274 = pneg %p106
        $region38: #{tpu_custom_call.1} parent=31 // pred_check_branch
          %276 = sbr.rel (%p274) target = $region40
        $region39: #{tpu_custom_call.1} parent=31 // pred_region
          %s277 = smul.u32 2, %s20
          %279 = vsyncadd %s270, 0
          %s280 = smul.addr %s277, 8
          %s281 = scalar_lea.hbm %s3, %s280
          %s283 = sshll.u32 %s273, 4
          %s284 = int_to_ptr.vmem [resolvable:$true] %s283
          %s285 = sshll.u32 %s281, 4
          %s286 = int_to_ptr.hbm [resolvable:$true] %s285
          %288 = dma.vmem_to_hbm [thread:$0]  %s284, 256, %s286, %s270
        $region40: #{tpu_custom_call.1} parent=31 // pred_fallthru
          _
      $region32: #{tpu_custom_call.1} parent=5 // pred_fallthru
        _
      %p289 = scmp.le.s32.totalorder 2, %s15
      // Predicated region
      $region41: #{tpu_custom_call.1} parent=5 // pred_check
        %p290 = pneg %p289
      $region42: #{tpu_custom_call.1} parent=5 // pred_check_branch
        %292 = sbr.rel (%p290) target = $region44
      $region43: #{tpu_custom_call.1} parent=5 // pred_region
        %s293 = ssub.s32 %s15, 2
        // Predicated region
        $region45: #{tpu_custom_call.1} parent=43 // pred_check
          %p294 = pneg %p112
        $region46: #{tpu_custom_call.1} parent=43 // pred_check_branch
          %296 = sbr.rel (%p294) target = $region48
        $region47: #{tpu_custom_call.1} parent=43 // pred_region
          %s297 = sand.u32 %s97, 1
          %s298 = scalar_lea.sflag [#allocation4], %s297
          %s299 = sand.u32 %s97, 1
          %s300 = smul.addr %s299, 16
          %s301 = scalar_lea.vmem [#allocation5], %s300
          %303 = dma.done %s298, 256
        $region48: #{tpu_custom_call.1} parent=43 // pred_fallthru
          _
      $region44: #{tpu_custom_call.1} parent=5 // pred_fallthru
        _
    $region6: #{tpu_custom_call.1} parent=1 // loop_footer
      %s19 = sadd.s32 1, %s15
    $region7: #{tpu_custom_call.1} parent=1 // loop_footer_branch
      %14 = sbr.rel target = $region3
    $region8: #{tpu_custom_call.1} parent=1 // loop_exit
      _
    %304 = vsyncpa [#allocation3], 1
    %s305 = scalar_lea.sflag [#allocation3], 1
    %306 = vsyncpa %s305, 1
    %307 = vsyncpa [#allocation4], 1
    %s308 = scalar_lea.sflag [#allocation4], 1
    %309 = vsyncpa %s308, 1

</llo_original>
